<compile_context>
chip_gen: v7x
topology: tpu7x:2x2x1
jax: 0.10.0
libtpu: 0.0.40
codegen_flags: <defaults>
</compile_context>

<pallas_src>
import functools
import math

import jax
import jax.numpy as jnp
from jax import lax
from jax.experimental import pallas as pl
from jax.experimental.pallas import tpu as pltpu

LN_EPS = 1e-6  # Block() constructs both LayerNorms with eps=1e-6


def _round_up(x, m):
    return ((x + m - 1) // m) * m


def _vmem_limit_bytes():
    """Headroom-aware scoped-VMEM limit per TPU generation."""
    cap = 64 * 1024 * 1024  # conservative fallback (v7x-sized)
    try:
        info = pltpu.get_tpu_info()
        cap = int(getattr(info, "vmem_capacity_bytes", cap))
    except Exception:
        pass
    # v7x (64 MiB phys) -> ~52 MiB; v5e/v6e (128 MiB phys) -> 96 MiB.
    return int(min(96 * 1024 * 1024, max(32 * 1024 * 1024, cap - 12 * 1024 * 1024)))


def _layernorm_f32(x, gamma, beta, eps):
    # TF-style LayerNorm (epsilon inside the sqrt), matching the reference module.
    x = x.astype(jnp.float32)
    u = jnp.mean(x, axis=-1, keepdims=True)
    s = jnp.mean((x - u) ** 2, axis=-1, keepdims=True)
    xn = (x - u) * lax.rsqrt(s + eps)
    return gamma.astype(jnp.float32) * xn + beta.astype(jnp.float32)


def _gelu_exact(x):
    # torch.nn.functional.gelu default = exact erf GELU.
    return 0.5 * x * (1.0 + lax.erf(x * (1.0 / math.sqrt(2.0))))


# ----------------------------------------------------------------------------
# Kernel 1: attention_norm + fused QKV projection (token-tiled).
# ----------------------------------------------------------------------------
def _ln_qkv_kernel(x_ref, g_ref, b_ref, w_ref, bias_ref, q_ref, k_ref, v_ref):
    H = q_ref.shape[-1]
    xn = _layernorm_f32(x_ref[...], g_ref[...], b_ref[...], LN_EPS)
    cdt = w_ref.dtype                                        # MXU operand dtype (f32/bf16)
    qkv = jnp.dot(xn.astype(cdt), w_ref[...],
                  preferred_element_type=jnp.float32) + bias_ref[...]
    q_ref[...] = qkv[:, :H].astype(q_ref.dtype)
    k_ref[...] = qkv[:, H:2 * H].astype(k_ref.dtype)
    v_ref[...] = qkv[:, 2 * H:].astype(v_ref.dtype)


# ----------------------------------------------------------------------------
# Kernel 2: multi-head softmax attention + single out-proj dot + residual.
# Grid = (batch, query tiles), both "parallel".
# ----------------------------------------------------------------------------
def _attn_core_kernel(x_ref, q_ref, k_ref, v_ref, wo_ref, bo_ref, o_ref, ctx_ref,
                      *, num_heads, head_dim, approx_recip):
    x_res = x_ref[0].astype(jnp.float32)                      # (tq, H) pre-norm residual
    q = q_ref[0]                                              # (tq, H) compute dtype
    k = k_ref[0]                                              # (N,  H)
    v = v_ref[0]                                              # (N,  H)
    cdt = q.dtype
    scale = 1.0 / math.sqrt(head_dim)

    # Static unroll over heads; ctx is staged into a (tq, H) VMEM buffer so the
    # out projection is a single K=H MXU dot instead of num_heads K=head_dim dots.
    for h in range(num_heads):
        lo, hi = h * head_dim, (h + 1) * head_dim
        s = lax.dot_general(q[:, lo:hi], k[:, lo:hi],
                            (((1,), (1,)), ((), ())),
                            preferred_element_type=jnp.float32) * scale     # (tq, N)
        s = s - jnp.max(s, axis=-1, keepdims=True)
        e = jnp.exp(s)
        denom = jnp.sum(e, axis=-1, keepdims=True)
        p = e * pl.reciprocal(denom, approx=approx_recip)      # attn_dropout = identity (eval)
        ctx_h = jnp.dot(p.astype(cdt), v[:, lo:hi],
                        preferred_element_type=jnp.float32)    # (tq, head_dim)
        ctx_ref[:, lo:hi] = ctx_h.astype(ctx_ref.dtype)

    out = jnp.dot(ctx_ref[...], wo_ref[...], preferred_element_type=jnp.float32)
    out = out + bo_ref[...]                                    # proj_dropout = identity (eval)
    o_ref[0] = (out + x_res).astype(o_ref.dtype)               # residual


def _pick_rows(T):
    cap = _round_up(max(T, 8), 8)
    for t in (512, 256, 128, 64, 32, 16, 8):
        if t <= cap:
            return t
    return 8


def _pick_q_tile(N):
    for t in (256, 128, 64, 32, 16, 8):
        if N % t == 0:
            return t
    return N  # odd sequence lengths (e.g. 197): single full-extent query tile


def attention_block(x, gamma, beta, wqkv, bqkv, wo, bo, *, num_heads, vmem_limit):
    B, N, H = x.shape
    assert H % num_heads == 0
    head_dim = H // num_heads
    cdt = wqkv.dtype

    # --- Kernel 1: LN + fused QKV projection over flattened tokens ---
    T = B * N
    x2d = x.reshape(T, H)
    tm = _pick_rows(T)
    T_pad = _round_up(T, tm)
    if T_pad != T:
        x2d = jnp.pad(x2d, ((0, T_pad - T), (0, 0)))

    q2d, k2d, v2d = pl.pallas_call(
        _ln_qkv_kernel,
        out_shape=tuple(jax.ShapeDtypeStruct((T_pad, H), cdt) for _ in range(3)),
        grid_spec=pltpu.PrefetchScalarGridSpec(
            num_scalar_prefetch=0,
            grid=(T_pad // tm,),
            in_specs=[
                pl.BlockSpec((tm, H), lambda i: (i, 0)),         # x tile
                pl.BlockSpec((1, H), lambda i: (0, 0)),          # LN gamma
                pl.BlockSpec((1, H), lambda i: (0, 0)),          # LN beta
                pl.BlockSpec((H, 3 * H), lambda i: (0, 0)),      # fused wq|wk|wv
                pl.BlockSpec((1, 3 * H), lambda i: (0, 0)),      # fused bq|bk|bv
            ],
            out_specs=[pl.BlockSpec((tm, H), lambda i: (i, 0))] * 3,
        ),
        compiler_params=pltpu.CompilerParams(
            dimension_semantics=("parallel",),
            vmem_limit_bytes=vmem_limit),
    )(x2d, gamma, beta, wqkv, bqkv)

    def _to_bnh(a):
        if T_pad != T:
            a = a[:T]
        return a.reshape(B, N, H)

    q, k, v = _to_bnh(q2d), _to_bnh(k2d), _to_bnh(v2d)

    # --- Kernel 2: attention core, grid over (batch, query tiles) ---
    tq = _pick_q_tile(N)
    kern = functools.partial(
        _attn_core_kernel, num_heads=num_heads, head_dim=head_dim,
        approx_recip=(cdt != jnp.float32))

    return pl.pallas_call(
        kern,
        out_shape=jax.ShapeDtypeStruct((B, N, H), x.dtype),
        grid_spec=pltpu.PrefetchScalarGridSpec(
            num_scalar_prefetch=0,
            grid=(B, N // tq),
            in_specs=[
                pl.BlockSpec((1, tq, H), lambda b, qi: (b, qi, 0)),  # x residual tile
                pl.BlockSpec((1, tq, H), lambda b, qi: (b, qi, 0)),  # q tile
                pl.BlockSpec((1, N, H), lambda b, qi: (b, 0, 0)),    # k (full seq)
                pl.BlockSpec((1, N, H), lambda b, qi: (b, 0, 0)),    # v (full seq)
                pl.BlockSpec((H, H), lambda b, qi: (0, 0)),          # wo
                pl.BlockSpec((1, H), lambda b, qi: (0, 0)),          # bo
            ],
            out_specs=pl.BlockSpec((1, tq, H), lambda b, qi: (b, qi, 0)),
            scratch_shapes=[pltpu.VMEM((tq, H), cdt)],               # per-head ctx staging
        ),
        compiler_params=pltpu.CompilerParams(
            dimension_semantics=("parallel", "parallel"),
            vmem_limit_bytes=vmem_limit),
    )(x, q, k, v, wo, bo)


# ----------------------------------------------------------------------------
# Kernel 3: ffn_norm + Mlp (fc1 -> erf GELU -> fc2) + residual.
# Grid = (token tiles ["parallel"], mlp-dim tiles ["arbitrary"]).
# ----------------------------------------------------------------------------
def _ffn_block_kernel(x_ref, g_ref, b_ref, w1_ref, b1_ref, w2_ref, b2_ref,
                      o_ref, xn_ref, acc_ref):
    j = pl.program_id(1)

    @pl.when(j == 0)
    def _init():
        # LayerNorm once per token tile; stored in the compute dtype and reused
        # across mlp-dim chunks.
        xn = _layernorm_f32(x_ref[...], g_ref[...], b_ref[...], LN_EPS)
        xn_ref[...] = xn.astype(xn_ref.dtype)
        acc_ref[...] = jnp.zeros_like(acc_ref)

    # fc1 chunk + bias + exact GELU, activations kept in f32.
    h = jnp.dot(xn_ref[...], w1_ref[...],
                preferred_element_type=jnp.float32) + b1_ref[...]
    h = _gelu_exact(h)
    # dropout = identity (eval mode)
    # fc2 partial product accumulated into the f32 scratch.
    acc_ref[...] += jnp.dot(h.astype(w2_ref.dtype), w2_ref[...],
                            preferred_element_type=jnp.float32)

    @pl.when(j == pl.num_programs(1) - 1)
    def _finalize():
        # b2 and the residual are added exactly once (not per reduction step).
        out = acc_ref[...] + b2_ref[...] + x_ref[...].astype(jnp.float32)
        o_ref[...] = out.astype(o_ref.dtype)                  # dropout = identity (eval)


def _ffn_vmem_bytes(tm, t_mlp, H, wbytes):
    wslab = 2 * 2 * H * t_mlp * wbytes            # w1 + w2 slabs, double-buffered
    io = 2 * 2 * tm * H * 4                        # x tile + out tile (f32), double-buffered
    scratch = tm * H * (wbytes + 4)                # xn (compute dtype) + f32 accumulator
    inter = 2 * tm * t_mlp * 4                     # fc1/GELU f32 temporaries (with headroom)
    bias = 2 * (t_mlp + 2 * H) * 4
    return wslab + io + scratch + inter + bias


def _pick_ffn_tiles(T, H, M, wbytes, vmem_limit):
    """Largest (tm, t_mlp) that fits ~70% of the scoped VMEM limit; prefers
    full-M (grid-invariant weights, DMA'd once) with the biggest token tile."""
    budget = int(vmem_limit * 0.7)
    row_cap = _round_up(max(T, 8), 8)
    mlp_cands = [M] + [c for c in (2048, 1024, 512, 256, 128) if c < M and M % c == 0]
    for t_mlp in mlp_cands:
        for tm in (512, 256, 128, 64, 32, 16, 8):
            if tm > row_cap:
                continue
            if _ffn_vmem_bytes(tm, t_mlp, H, wbytes) <= budget:
                return tm, t_mlp
    return min(8, row_cap), mlp_cands[-1]


def ffn_block(x, gamma, beta, w1, b1, w2, b2, *, vmem_limit):
    B, N, H = x.shape
    M = w1.shape[1]
    cdt = w1.dtype
    T = B * N
    x2d = x.reshape(T, H)

    tm, t_mlp = _pick_ffn_tiles(T, H, M, w1.dtype.itemsize, vmem_limit)
    T_pad = _round_up(T, tm)
    if T_pad != T:
        x2d = jnp.pad(x2d, ((0, T_pad - T), (0, 0)))
    assert M % t_mlp == 0
    grid = (T_pad // tm, M // t_mlp)

    out2d = pl.pallas_call(
        _ffn_block_kernel,
        out_shape=jax.ShapeDtypeStruct((T_pad, H), x.dtype),
        grid_spec=pltpu.PrefetchScalarGridSpec(
            num_scalar_prefetch=0,
            grid=grid,
            in_specs=[
                pl.BlockSpec((tm, H), lambda i, j: (i, 0)),      # x tile (LN input + residual)
                pl.BlockSpec((1, H), lambda i, j: (0, 0)),       # ffn_norm gamma
                pl.BlockSpec((1, H), lambda i, j: (0, 0)),       # ffn_norm beta
                pl.BlockSpec((H, t_mlp), lambda i, j: (0, j)),   # w1 slab
                pl.BlockSpec((1, t_mlp), lambda i, j: (0, j)),   # b1 slab
                pl.BlockSpec((t_mlp, H), lambda i, j: (j, 0)),   # w2 slab
                pl.BlockSpec((1, H), lambda i, j: (0, 0)),       # b2
            ],
            out_specs=pl.BlockSpec((tm, H), lambda i, j: (i, 0)),
            scratch_shapes=[
                pltpu.VMEM((tm, H), cdt),          # normalized x in compute dtype
                pltpu.VMEM((tm, H), jnp.float32),  # fc2 accumulator
            ],
        ),
        compiler_params=pltpu.CompilerParams(
            dimension_semantics=("parallel", "arbitrary"),
            vmem_limit_bytes=vmem_limit),
    )(x2d, gamma, beta, w1, b1, w2, b2)

    if T_pad != T:
        out2d = out2d[:T]
    return out2d.reshape(B, N, H)


# ----------------------------------------------------------------------------
# Parameter preparation (ONE-TIME weight cast / QKV fusion) + full Block forward.
# ----------------------------------------------------------------------------
def prepare_block_params(params, compute_dtype=jnp.bfloat16):
    """Cast matmul weights to the MXU compute dtype and fuse Q|K|V once,
    outside the per-call forward path."""
    cdt = compute_dtype
    f32 = jnp.float32
    return {
        "attn_norm_g": params["attn_norm_g"].astype(f32),
        "attn_norm_b": params["attn_norm_b"].astype(f32),
        "ffn_norm_g": params["ffn_norm_g"].astype(f32),
        "ffn_norm_b": params["ffn_norm_b"].astype(f32),
        "wqkv": jnp.concatenate([params["wq"], params["wk"], params["wv"]], axis=1).astype(cdt),
        "bqkv": jnp.concatenate([params["bq"], params["bk"], params["bv"]], axis=1).astype(f32),
        "wo": params["wo"].astype(cdt), "bo": params["bo"].astype(f32),
        "w1": params["w1"].astype(cdt), "b1": params["b1"].astype(f32),
        "w2": params["w2"].astype(cdt), "b2": params["b2"].astype(f32),
    }


def block_forward(x, prepared, *, num_heads):
    """ViT encoder Block forward. Returns (out, attention_weights=None)."""
    vmem_limit = _vmem_limit_bytes()
    attn_out = attention_block(
        x, prepared["attn_norm_g"], prepared["attn_norm_b"],
        prepared["wqkv"], prepared["bqkv"], prepared["wo"], prepared["bo"],
        num_heads=num_heads, vmem_limit=vmem_limit)
    out = ffn_block(
        attn_out, prepared["ffn_norm_g"], prepared["ffn_norm_b"],
        prepared["w1"], prepared["b1"], prepared["w2"], prepared["b2"],
        vmem_limit=vmem_limit)
    return out, None  # vis=False -> attention weights are None


def init_block_params(key, hidden_size, mlp_dim, dtype=jnp.float32):
    H, M = hidden_size, mlp_dim
    ks = jax.random.split(key, 16)

    def xavier(k, shape):
        limit = math.sqrt(6.0 / (shape[0] + shape[1]))
        return jax.random.uniform(k, shape, dtype, minval=-limit, maxval=limit)

    return {
        # LayerNorms (weight=1, bias=0 in the module; perturbed slightly to exercise the path)
        "attn_norm_g": (1.0 + 0.05 * jax.random.normal(ks[0], (1, H))).astype(dtype),
        "attn_norm_b": (0.05 * jax.random.normal(ks[1], (1, H))).astype(dtype),
        "ffn_norm_g": (1.0 + 0.05 * jax.random.normal(ks[2], (1, H))).astype(dtype),
        "ffn_norm_b": (0.05 * jax.random.normal(ks[3], (1, H))).astype(dtype),
        # Attention Q/K/V/out Linear layers (y = x @ W + b)
        "wq": xavier(ks[4], (H, H)), "bq": (0.02 * jax.random.normal(ks[5], (1, H))).astype(dtype),
        "wk": xavier(ks[6], (H, H)), "bk": (0.02 * jax.random.normal(ks[7], (1, H))).astype(dtype),
        "wv": xavier(ks[8], (H, H)), "bv": (0.02 * jax.random.normal(ks[9], (1, H))).astype(dtype),
        "wo": xavier(ks[10], (H, H)), "bo": (0.02 * jax.random.normal(ks[11], (1, H))).astype(dtype),
        # Mlp: xavier weights, biases ~ N(0, 1e-6) as in Mlp._init_weights
        "w1": xavier(ks[12], (H, M)), "b1": (1e-6 * jax.random.normal(ks[13], (1, M))).astype(dtype),
        "w2": xavier(ks[14], (M, H)), "b2": (1e-6 * jax.random.normal(ks[15], (1, H))).astype(dtype),
    }


def block_reference(x, params, *, num_heads):
    """Plain-JAX reference of Block.forward (eval mode, dropout=identity)."""
    B, N, H = x.shape
    hd = H // num_heads

    def ln(v, g, b):
        u = v.mean(-1, keepdims=True)
        s = ((v - u) ** 2).mean(-1, keepdims=True)
        return g * (v - u) / jnp.sqrt(s + LN_EPS) + b

    h = x
    xn = ln(x, params["attn_norm_g"], params["attn_norm_b"])
    q = xn @ params["wq"] + params["bq"]
    k = xn @ params["wk"] + params["bk"]
    v = xn @ params["wv"] + params["bv"]
    q = q.reshape(B, N, num_heads, hd).transpose(0, 2, 1, 3)
    k = k.reshape(B, N, num_heads, hd).transpose(0, 2, 1, 3)
    v = v.reshape(B, N, num_heads, hd).transpose(0, 2, 1, 3)
    scores = (q @ jnp.swapaxes(k, -1, -2)) / math.sqrt(hd)
    probs = jax.nn.softmax(scores, axis=-1)
    ctx = (probs @ v).transpose(0, 2, 1, 3).reshape(B, N, H)
    attn_out = ctx @ params["wo"] + params["bo"]
    x1 = attn_out + h

    h2 = x1
    xn2 = ln(x1, params["ffn_norm_g"], params["ffn_norm_b"])
    hid = xn2 @ params["w1"] + params["b1"]
    hid = 0.5 * hid * (1.0 + lax.erf(hid / math.sqrt(2.0)))
    out = hid @ params["w2"] + params["b2"]
    return out + h2


if __name__ == "__main__":
    # Small config consistent with the module: hidden_size=32, mlp_dim=64, 4 heads.
    B, N, H, M, NUM_HEADS = 2, 8, 32, 64, 4

    key = jax.random.PRNGKey(0)
    kx, kp = jax.random.split(key)
    x = jax.random.normal(kx, (B, N, H), dtype=jnp.float32)
    params = init_block_params(kp, H, M)

    with jax.default_matmul_precision("highest"):
        ref = block_reference(x, params, num_heads=NUM_HEADS)

    # f32 MXU-operand verification path (weights prepared once).
    prep_f32 = prepare_block_params(params, compute_dtype=jnp.float32)
    out, w = block_forward(x, prep_f32, num_heads=NUM_HEADS)
    out = jax.block_until_ready(out)
    assert w is None
    assert out.shape == ref.shape
    max_err = float(jnp.max(jnp.abs(out - ref)))
    mean_err = float(jnp.mean(jnp.abs(out - ref)))
    # MXU f32 matmuls may use reduced-precision passes; bound both max and mean error.
    assert max_err < 2e-2, max_err
    assert mean_err < 3e-3, mean_err

    # bf16 MXU-operand path (production perf config) — loose smoke-test band.
    prep_bf16 = prepare_block_params(params, compute_dtype=jnp.bfloat16)
    out_bf16, _ = block_forward(x, prep_bf16, num_heads=NUM_HEADS)
    out_bf16 = jax.block_until_ready(out_bf16)
    assert bool(jnp.all(jnp.isfinite(out_bf16)))
    assert float(jnp.mean(jnp.abs(out_bf16.astype(jnp.float32) - ref))) < 0.1

    print("KERNEL_OK")
</pallas_src>

<mosaic_0001>
module attributes {stable_mosaic.version = 11 : i64} {
  func.func @_ln_qkv_kernel(%arg0: i32, %arg1: memref<16x32xf32, #tpu.memory_space<vmem>>, %arg2: memref<1x32xf32, #tpu.memory_space<vmem>>, %arg3: memref<1x32xf32, #tpu.memory_space<vmem>>, %arg4: memref<32x96xf32, #tpu.memory_space<vmem>>, %arg5: memref<1x96xf32, #tpu.memory_space<vmem>>, %arg6: memref<16x32xf32, #tpu.memory_space<vmem>>, %arg7: memref<16x32xf32, #tpu.memory_space<vmem>>, %arg8: memref<16x32xf32, #tpu.memory_space<vmem>>) attributes {dimension_semantics = [#tpu.dimension_semantics<parallel>], iteration_bounds = array<i64: 1>, scalar_prefetch = 0 : i64, scratch_operands = 0 : i64, tpu.core_type = #tpu.core_type<tc>, window_params = [{transform_indices = @transform_0, window_bounds = array<i64: 16, 32>}, {pipeline_mode = #tpu.pipeline_mode<synchronous>, transform_indices = @transform_1, window_bounds = array<i64: 1, 32>}, {pipeline_mode = #tpu.pipeline_mode<synchronous>, transform_indices = @transform_2, window_bounds = array<i64: 1, 32>}, {pipeline_mode = #tpu.pipeline_mode<synchronous>, transform_indices = @transform_3, window_bounds = array<i64: 32, 96>}, {pipeline_mode = #tpu.pipeline_mode<synchronous>, transform_indices = @transform_4, window_bounds = array<i64: 1, 96>}, {transform_indices = @transform_5, window_bounds = array<i64: 16, 32>}, {transform_indices = @transform_6, window_bounds = array<i64: 16, 32>}, {transform_indices = @transform_7, window_bounds = array<i64: 16, 32>}]} {
    %c0 = arith.constant 0 : index
    %c0_0 = arith.constant 0 : index
    %0 = vector.load %arg1[%c0, %c0_0] : memref<16x32xf32, #tpu.memory_space<vmem>>, vector<16x32xf32>
    %c0_1 = arith.constant 0 : index
    %c0_2 = arith.constant 0 : index
    %1 = vector.load %arg2[%c0_1, %c0_2] : memref<1x32xf32, #tpu.memory_space<vmem>>, vector<1x32xf32>
    %c0_3 = arith.constant 0 : index
    %c0_4 = arith.constant 0 : index
    %2 = vector.load %arg3[%c0_3, %c0_4] : memref<1x32xf32, #tpu.memory_space<vmem>>, vector<1x32xf32>
    %cst = arith.constant dense<0.000000e+00> : vector<16xf32>
    %3 = vector.multi_reduction <add>, %0, %cst [1] : vector<16x32xf32> to vector<16xf32>
    %4 = vector.shape_cast %3 : vector<16xf32> to vector<16x1xf32>
    %cst_5 = arith.constant 3.200000e+01 : f32
    %5 = vector.broadcast %cst_5 : f32 to vector<16x1xf32>
    %6 = arith.divf %4, %5 : vector<16x1xf32>
    %7 = vector.broadcast %6 : vector<16x1xf32> to vector<16x32xf32>
    %8 = arith.subf %0, %7 : vector<16x32xf32>
    %9 = arith.mulf %8, %8 : vector<16x32xf32>
    %cst_6 = arith.constant dense<0.000000e+00> : vector<16xf32>
    %10 = vector.multi_reduction <add>, %9, %cst_6 [1] : vector<16x32xf32> to vector<16xf32>
    %11 = vector.shape_cast %10 : vector<16xf32> to vector<16x1xf32>
    %cst_7 = arith.constant 3.200000e+01 : f32
    %12 = vector.broadcast %cst_7 : f32 to vector<16x1xf32>
    %13 = arith.divf %11, %12 : vector<16x1xf32>
    %14 = vector.broadcast %6 : vector<16x1xf32> to vector<16x32xf32>
    %15 = arith.subf %0, %14 : vector<16x32xf32>
    %cst_8 = arith.constant 9.99999997E-7 : f32
    %16 = vector.broadcast %cst_8 : f32 to vector<16x1xf32>
    %17 = arith.addf %13, %16 : vector<16x1xf32>
    %18 = math.rsqrt %17 : vector<16x1xf32>
    %19 = vector.broadcast %18 : vector<16x1xf32> to vector<16x32xf32>
    %20 = arith.mulf %15, %19 : vector<16x32xf32>
    %21 = vector.broadcast %1 : vector<1x32xf32> to vector<16x32xf32>
    %22 = arith.mulf %21, %20 : vector<16x32xf32>
    %23 = vector.broadcast %2 : vector<1x32xf32> to vector<16x32xf32>
    %24 = arith.addf %22, %23 : vector<16x32xf32>
    %c0_9 = arith.constant 0 : index
    %c0_10 = arith.constant 0 : index
    %25 = vector.load %arg4[%c0_9, %c0_10] : memref<32x96xf32, #tpu.memory_space<vmem>>, vector<32x96xf32>
    %cst_11 = arith.constant dense<0.000000e+00> : vector<16x96xf32>
    %26 = tpu.matmul %24, %25, %cst_11 {dimension_numbers = #tpu.dot_dimension_numbers<[1], [0], [0], [1], [0, 0, 1, 1], [], []>} : vector<16x32xf32>, vector<32x96xf32>, vector<16x96xf32> -> vector<16x96xf32>
    %c0_12 = arith.constant 0 : index
    %c0_13 = arith.constant 0 : index
    %27 = vector.load %arg5[%c0_12, %c0_13] : memref<1x96xf32, #tpu.memory_space<vmem>>, vector<1x96xf32>
    %28 = vector.broadcast %27 : vector<1x96xf32> to vector<16x96xf32>
    %29 = arith.addf %26, %28 : vector<16x96xf32>
    %30 = vector.extract_strided_slice %29 {offsets = [0, 0], sizes = [16, 32], strides = [1, 1]} : vector<16x96xf32> to vector<16x32xf32>
    %c0_14 = arith.constant 0 : index
    %c0_15 = arith.constant 0 : index
    %31 = vector.load %arg6[%c0_14, %c0_15] : memref<16x32xf32, #tpu.memory_space<vmem>>, vector<16x32xf32>
    tpu.vector_store %arg6[%c0_14, %c0_15], %30 {strides = array<i32>} : memref<16x32xf32, #tpu.memory_space<vmem>>, vector<16x32xf32>,
    %32 = vector.extract_strided_slice %29 {offsets = [0, 32], sizes = [16, 32], strides = [1, 1]} : vector<16x96xf32> to vector<16x32xf32>
    %c0_16 = arith.constant 0 : index
    %c0_17 = arith.constant 0 : index
    %33 = vector.load %arg7[%c0_16, %c0_17] : memref<16x32xf32, #tpu.memory_space<vmem>>, vector<16x32xf32>
    tpu.vector_store %arg7[%c0_16, %c0_17], %32 {strides = array<i32>} : memref<16x32xf32, #tpu.memory_space<vmem>>, vector<16x32xf32>,
    %34 = vector.extract_strided_slice %29 {offsets = [0, 64], sizes = [16, 32], strides = [1, 1]} : vector<16x96xf32> to vector<16x32xf32>
    %c0_18 = arith.constant 0 : index
    %c0_19 = arith.constant 0 : index
    %35 = vector.load %arg8[%c0_18, %c0_19] : memref<16x32xf32, #tpu.memory_space<vmem>>, vector<16x32xf32>
    tpu.vector_store %arg8[%c0_18, %c0_19], %34 {strides = array<i32>} : memref<16x32xf32, #tpu.memory_space<vmem>>, vector<16x32xf32>,
    return
  }
  func.func @transform_0(%arg0: i32) -> (i32, i32) {
    %c0_i32 = arith.constant 0 : i32
    %c0_i32_0 = arith.constant 0 : i32
    return %arg0, %c0_i32 : i32, i32
  }
  func.func @transform_1(%arg0: i32) -> (i32, i32) {
    %c0_i32 = arith.constant 0 : i32
    %c0_i32_0 = arith.constant 0 : i32
    %c0_i32_1 = arith.constant 0 : i32
    return %c0_i32, %c0_i32_0 : i32, i32
  }
  func.func @transform_2(%arg0: i32) -> (i32, i32) {
    %c0_i32 = arith.constant 0 : i32
    %c0_i32_0 = arith.constant 0 : i32
    %c0_i32_1 = arith.constant 0 : i32
    return %c0_i32, %c0_i32_0 : i32, i32
  }
  func.func @transform_3(%arg0: i32) -> (i32, i32) {
    %c0_i32 = arith.constant 0 : i32
    %c0_i32_0 = arith.constant 0 : i32
    %c0_i32_1 = arith.constant 0 : i32
    return %c0_i32, %c0_i32_0 : i32, i32
  }
  func.func @transform_4(%arg0: i32) -> (i32, i32) {
    %c0_i32 = arith.constant 0 : i32
    %c0_i32_0 = arith.constant 0 : i32
    %c0_i32_1 = arith.constant 0 : i32
    return %c0_i32, %c0_i32_0 : i32, i32
  }
  func.func @transform_5(%arg0: i32) -> (i32, i32) {
    %c0_i32 = arith.constant 0 : i32
    %c0_i32_0 = arith.constant 0 : i32
    return %arg0, %c0_i32 : i32, i32
  }
  func.func @transform_6(%arg0: i32) -> (i32, i32) {
    %c0_i32 = arith.constant 0 : i32
    %c0_i32_0 = arith.constant 0 : i32
    return %arg0, %c0_i32 : i32, i32
  }
  func.func @transform_7(%arg0: i32) -> (i32, i32) {
    %c0_i32 = arith.constant 0 : i32
    %c0_i32_0 = arith.constant 0 : i32
    return %arg0, %c0_i32 : i32, i32
  }
}

</mosaic_0001>

<llo_original>
// kernel: tpu_custom_call.1
$region0: #{tpu_custom_call.1}
  #allocation0 [shape = 'u32[]', space=smem, size = 0x4, offset = 0x4, fixed_abs, tag = 'smem constant byte address 0x4 - core index']
  #allocation1 [shape = 'u32[144,128]{1,0:T(1,128)}', space=vmem, size = 0x12000, scoped, tag = 'internal scratch']
  %s0 = inlined_call_operand.hbm [shape: f32[16,32], index: 0, kind: input, shape index: {}]
  %s1 = inlined_call_operand.vmem [shape: f32[1,32], index: 1, kind: input, shape index: {}]
  %s2 = inlined_call_operand.vmem [shape: f32[1,32], index: 2, kind: input, shape index: {}]
  %s3 = inlined_call_operand.hbm [shape: f32[32,96], index: 3, kind: input, shape index: {}]
  %s4 = inlined_call_operand.vmem [shape: f32[1,96], index: 4, kind: input, shape index: {}]
  %s5 = inlined_call_operand.hbm [shape: f32[16,32], index: 5, kind: output, shape index: {0}]
  %s6 = inlined_call_operand.hbm [shape: f32[16,32], index: 6, kind: output, shape index: {1}]
  %s7 = inlined_call_operand.hbm [shape: f32[16,32], index: 7, kind: output, shape index: {2}]
  %8 = xla_tuple %s5, %s6, %s7
  %s9 = sld [smem:[#allocation0]]
  $region54: #{tpu_custom_call.1} parent=0
    _
  %s11 = ssub.s32 1, %s9
  %s12 = scalar_select 0, %s11, %s9
  $region1: #{tpu_custom_call.1} parent=0
    #allocation2 [shape = 'u8[8192]{0}', space=vmem, size = 0x2000, scoped, tag = 'input window, operand 0, single buffered']
    #allocation3 [shape = 's32[1]{0}', space=sflag, size = 0x4, scoped, tag = 'scoped memory for tpu_custom_call.1']
    #allocation4 [shape = 's32[1]{0}', space=sflag, size = 0x4, scoped, tag = 'scoped memory for tpu_custom_call.1']
    #allocation5 [shape = 'u8[16384]{0}', space=vmem, size = 0x4000, scoped, tag = 'input window, operand 3, single buffered']
    #allocation6 [shape = 's32[1]{0}', space=sflag, size = 0x4, scoped, tag = 'scoped memory for tpu_custom_call.1']
    #allocation7 [shape = 'u8[8192]{0}', space=vmem, size = 0x2000, scoped, tag = 'output window, operand 0, single buffered']
    #allocation8 [shape = 'u8[8192]{0}', space=vmem, size = 0x2000, scoped, tag = 'output window, operand 1, single buffered']
    #allocation9 [shape = 's32[1]{0}', space=sflag, size = 0x4, scoped, tag = 'scoped memory for tpu_custom_call.1']
    #allocation10 [shape = 'u8[8192]{0}', space=vmem, size = 0x2000, scoped, tag = 'output window, operand 2, single buffered']
    %13 = vsyncpa [#allocation3], 0
    %14 = vsyncpa [#allocation6], 0
    %15 = vsyncpa [#allocation4], 0
    %16 = vsyncpa [#allocation9], 0
    // Predicated region
    $region2: #{tpu_custom_call.1} parent=1 // pred_check
      _
    $region3: #{tpu_custom_call.1} parent=1 // pred_check_branch
      %18 = sbr.rel (0) target = $region5
    $region4: #{tpu_custom_call.1} parent=1 // pred_region
      %s20 = ssub.s32 256, 256
      %21 = vsyncadd [#allocation3], %s20
      %s22 = sshll.u32 [#allocation2], 4
      %s23 = int_to_ptr.vmem [resolvable:$true] %s22
      %28 = dma.hbm_to_vmem [thread:$0]  %s0, 256, %s23, [#allocation3], 128, 128, 8
    $region5: #{tpu_custom_call.1} parent=1 // pred_fallthru
      _
    // Predicated region
    $region6: #{tpu_custom_call.1} parent=1 // pred_check
      _
    $region7: #{tpu_custom_call.1} parent=1 // pred_check_branch
      %30 = sbr.rel (0) target = $region9
    $region8: #{tpu_custom_call.1} parent=1 // pred_region
      _
    $region9: #{tpu_custom_call.1} parent=1 // pred_fallthru
      _
    // Predicated region
    $region10: #{tpu_custom_call.1} parent=1 // pred_check
      _
    $region11: #{tpu_custom_call.1} parent=1 // pred_check_branch
      %32 = sbr.rel (0) target = $region13
    $region12: #{tpu_custom_call.1} parent=1 // pred_region
      _
    $region13: #{tpu_custom_call.1} parent=1 // pred_fallthru
      _
    // Predicated region
    $region14: #{tpu_custom_call.1} parent=1 // pred_check
      _
    $region15: #{tpu_custom_call.1} parent=1 // pred_check_branch
      %34 = sbr.rel (0) target = $region17
    $region16: #{tpu_custom_call.1} parent=1 // pred_region
      %s36 = ssub.s32 512, 512
      %37 = vsyncadd [#allocation6], %s36
      %s38 = sshll.u32 [#allocation5], 4
      %s39 = int_to_ptr.vmem [resolvable:$true] %s38
      %44 = dma.hbm_to_vmem [thread:$0]  %s3, 512, %s39, [#allocation6], 128, 128, 8
    $region17: #{tpu_custom_call.1} parent=1 // pred_fallthru
      _
    // Predicated region
    $region18: #{tpu_custom_call.1} parent=1 // pred_check
      _
    $region19: #{tpu_custom_call.1} parent=1 // pred_check_branch
      %46 = sbr.rel (0) target = $region21
    $region20: #{tpu_custom_call.1} parent=1 // pred_region
      _
    $region21: #{tpu_custom_call.1} parent=1 // pred_fallthru
      _
    // Predicated region
    $region22: #{tpu_custom_call.1} parent=1 // pred_check
      _
    $region23: #{tpu_custom_call.1} parent=1 // pred_check_branch
      %48 = sbr.rel (0) target = $region25
    $region24: #{tpu_custom_call.1} parent=1 // pred_region
      %49 = dma.done [#allocation3], 256
    $region25: #{tpu_custom_call.1} parent=1 // pred_fallthru
      _
    // Predicated region
    $region26: #{tpu_custom_call.1} parent=1 // pred_check
      _
    $region27: #{tpu_custom_call.1} parent=1 // pred_check_branch
      %51 = sbr.rel (0) target = $region29
    $region28: #{tpu_custom_call.1} parent=1 // pred_region
      %52 = dma.done [#allocation6], 512
    $region29: #{tpu_custom_call.1} parent=1 // pred_fallthru
      _
    %v53 = vld [vmem:[#allocation2] sm:$0xff]
    %v54 = vld [vmem:[#allocation2 + $0x8] sm:$0xff]
    %v55 = vld [vmem:[%s1] sm:$0x1]
    %v56 = vld [vmem:[%s2] sm:$0x1]
    %vm57 = vcmask 261120
    %v58 = vsel %vm57, %v53, 0.0
    %59 = vadd.xlane.f32.xlu0 %v58
    %v60 = vpop.xlane.xlu0 %59
    %v61 = vsel %vm57, %v54, 0.0
    %62 = vadd.xlane.f32.xlu0 %v61
    %v63 = vpop.xlane.xlu0 %62
    %v64 = vrcp.pop 32.0
    %v65 = vmul.f32 %v60, %v64
    %v66 = vmul.f32 %v63, %v64
    %v67 = vsub.f32 %v53, %v65
    %v68 = vsub.f32 %v54, %v66
    %v69 = vmul.f32 %v67, %v67
    %v70 = vmul.f32 %v68, %v68
    %v71 = vsel %vm57, %v69, 0.0
    %72 = vadd.xlane.f32.xlu0 %v71
    %v73 = vpop.xlane.xlu0 %72
    %v74 = vsel %vm57, %v70, 0.0
    %75 = vadd.xlane.f32.xlu0 %v74
    %v76 = vpop.xlane.xlu0 %75
    %v77 = vmul.f32 %v73, %v64
    %v78 = vmul.f32 %v76, %v64
    %v79 = vadd.f32 %v77, 1e-06
    %v80 = vadd.f32 %v78, 1e-06
    %v81 = vrsqrt.pop %v79
    %v82 = vrsqrt.pop %v80
    %v83 = vmul.f32 %v67, %v81
    %v84 = vmul.f32 %v68, %v82
    %v86 = vlaneseq
    %v87 = vshrl.u32 %v86, 7
    %v88 = vsub.s32 0, %v87
    %v89 = vrot.slane %v55, %v88
    %v91 = vmul.f32 %v89, %v83
    %v92 = vmul.f32 %v89, %v84
    %v94 = vlaneseq
    %v95 = vshrl.u32 %v94, 7
    %v96 = vsub.s32 0, %v95
    %v97 = vrot.slane %v56, %v96
    %v99 = vadd.f32 %v91, %v97
    %v100 = vadd.f32 %v92, %v97
    %v101 = vld [vmem:[#allocation5] sm:$0xff]
    %v102 = vld [vmem:[#allocation5 + $0x8] sm:$0xff]
    %v103 = vld [vmem:[#allocation5 + $0x10] sm:$0xff]
    %v104 = vld [vmem:[#allocation5 + $0x18] sm:$0xff]
    %v105 = vld [vmem:[%s4] sm:$0x1]
    %v107 = vlaneseq
    %v108 = vshrl.u32 %v107, 7
    %v109 = vsub.s32 0, %v108
    %v110 = vrot.slane %v105, %v109
    %v113 = vsel %vm57, %v99, 0
    %v116 = vsel %vm57, %v100, 0
    %118 = vmatprep.subr.mxu0 0.0
    %119 = vmatpush1.msra.mxu0 %v101
    %120 = vmatprep.subr.mxu0 0.0
    %121 = vmatpush1.msra.mxu0 %v102
    %122 = vmatprep.subr.mxu0 0.0
    %123 = vmatpush1.msra.mxu0 %v103
    %124 = vmatprep.subr.mxu0 0.0
    %125 = vmatpush1.msra.mxu0 %v104
    %126 = vmatprep.subr.mxu0 0.0
    %127 = vmatpush1.msra.mxu0 0.0
    %128 = vmatprep.subr.mxu0 0.0
    %129 = vmatpush1.msra.mxu0 0.0
    %130 = vmatprep.subr.mxu0 0.0
    %131 = vmatpush1.msra.mxu0 0.0
    %132 = vmatprep.subr.mxu0 0.0
    %133 = vmatpush1.msra.mxu0 0.0
    %134 = vmatprep.subr.mxu0 0.0
    %135 = vmatpush1.msra.mxu0 0.0
    %136 = vmatprep.subr.mxu0 0.0
    %137 = vmatpush1.msra.mxu0 0.0
    %138 = vmatprep.subr.mxu0 0.0
    %139 = vmatpush1.msra.mxu0 0.0
    %140 = vmatprep.subr.mxu0 0.0
    %141 = vmatpush1.msra.mxu0 0.0
    %142 = vmatprep.subr.mxu0 0.0
    %143 = vmatpush1.msra.mxu0 0.0
    %144 = vmatprep.subr.mxu0 0.0
    %145 = vmatpush1.msra.mxu0 0.0
    %146 = vmatprep.subr.mxu0 0.0
    %147 = vmatpush1.msra.mxu0 0.0
    %148 = vmatprep.subr.mxu0 0.0
    %149 = vmatpush1.msra.mxu0 0.0
    %150 = vmatprep.subr.mxu0 0.0
    %151 = vmatpush1.msra.mxu0 0.0
    %152 = vmatprep.subr.mxu0 0.0
    %153 = vmatpush1.msra.mxu0 0.0
    %154 = vmatprep.subr.mxu0 0.0
    %155 = vmatpush1.msra.mxu0 0.0
    %156 = vmatprep.subr.mxu0 0.0
    %157 = vmatpush1.msra.mxu0 0.0
    %158 = vmatprep.subr.mxu0 0.0
    %159 = vmatpush1.msra.mxu0 0.0
    %160 = vmatprep.subr.mxu0 0.0
    %161 = vmatpush1.msra.mxu0 0.0
    %162 = vmatprep.subr.mxu0 0.0
    %163 = vmatpush1.msra.mxu0 0.0
    %164 = vmatprep.subr.mxu0 0.0
    %165 = vmatpush1.msra.mxu0 0.0
    %166 = vmatprep.subr.mxu0 0.0
    %167 = vmatpush1.msra.mxu0 0.0
    %168 = vmatprep.subr.mxu0 0.0
    %169 = vmatpush1.msra.mxu0 0.0
    %170 = vmatprep.subr.mxu0 0.0
    %171 = vmatpush1.msra.mxu0 0.0
    %172 = vmatprep.subr.mxu0 0.0
    %173 = vmatpush1.msra.mxu0 0.0
    %174 = vmatprep.subr.mxu0 0.0
    %175 = vmatpush1.msra.mxu0 0.0
    %176 = vmatprep.subr.mxu0 0.0
    %177 = vmatpush1.msra.mxu0 0.0
    %178 = vmatprep.subr.mxu0 0.0
    %179 = vmatpush1.msra.mxu0 0.0
    %180 = vmatprep.subr.mxu0 0.0
    %181 = vmatpush1.msra.mxu0 0.0
    %182 = vmatprep.mubr.f32.mxu0 0.0
    %183 = vmatmul.mubr.f32.gmra.mrb[0].mxu0 %v113
    %v184 = vpop.f32.mrb[0].mxu0
    %v185 = vadd.f32 %v110, %v184
    %v186 = vpop.f32.mrb[0].mxu0
    %187 = vmatprep.mubr.f32.mxu0 0.0
    %188 = vmatmul.mubr.f32.gmra.mrb[0].mxu0 %v116
    %v189 = vpop.f32.mrb[0].mxu0
    %v190 = vadd.f32 %v110, %v189
    %v191 = vpop.f32.mrb[0].mxu0
    %192 = vdwg.mxu0
    %193 = vst.msk [vmem:[#allocation7] sm:$0xff] %vm57, %v185
    %194 = vst.msk [vmem:[#allocation7 + $0x8] sm:$0xff] %vm57, %v190
    %197 = vrot.lane.b32.xlu0 %v185, 96
    %v198 = vpop.permute.xlu0 %197
    %199 = vrot.lane.b32.xlu0 %v190, 96
    %v200 = vpop.permute.xlu0 %199
    %203 = vst.msk [vmem:[#allocation8] sm:$0xff] %vm57, %v198
    %204 = vst.msk [vmem:[#allocation8 + $0x8] sm:$0xff] %vm57, %v200
    %205 = vrot.lane.b32.xlu0 %v185, 64
    %v206 = vpop.permute.xlu0 %205
    %207 = vrot.lane.b32.xlu0 %v190, 64
    %v208 = vpop.permute.xlu0 %207
    %211 = vst.msk [vmem:[#allocation10] sm:$0xff] %vm57, %v206
    %212 = vst.msk [vmem:[#allocation10 + $0x8] sm:$0xff] %vm57, %v208
    // Predicated region
    $region30: #{tpu_custom_call.1} parent=1 // pred_check
      _
    $region31: #{tpu_custom_call.1} parent=1 // pred_check_branch
      %214 = sbr.rel (0) target = $region33
    $region32: #{tpu_custom_call.1} parent=1 // pred_region
      %s216 = ssub.s32 256, 256
      %217 = vsyncadd [#allocation4], %s216
      %s218 = sshll.u32 [#allocation7], 4
      %s219 = int_to_ptr.vmem [resolvable:$true] %s218
      %224 = dma.vmem_to_hbm [thread:$0]  %s219, 256, %s5, [#allocation4], 128, 128, 8
    $region33: #{tpu_custom_call.1} parent=1 // pred_fallthru
      _
    // Predicated region
    $region34: #{tpu_custom_call.1} parent=1 // pred_check
      _
    $region35: #{tpu_custom_call.1} parent=1 // pred_check_branch
      %226 = sbr.rel (0) target = $region37
    $region36: #{tpu_custom_call.1} parent=1 // pred_region
      %s228 = ssub.s32 256, 256
      %229 = vsyncadd [#allocation9], %s228
      %s230 = sshll.u32 [#allocation8], 4
      %s231 = int_to_ptr.vmem [resolvable:$true] %s230
      %236 = dma.vmem_to_hbm [thread:$0]  %s231, 256, %s6, [#allocation9], 128, 128, 8
    $region37: #{tpu_custom_call.1} parent=1 // pred_fallthru
      _
    // Predicated region
    $region38: #{tpu_custom_call.1} parent=1 // pred_check
      _
    $region39: #{tpu_custom_call.1} parent=1 // pred_check_branch
      %238 = sbr.rel (0) target = $region41
    $region40: #{tpu_custom_call.1} parent=1 // pred_region
      %s240 = ssub.s32 256, 256
      %241 = vsyncadd [#allocation9], %s240
      %s242 = sshll.u32 [#allocation10], 4
      %s243 = int_to_ptr.vmem [resolvable:$true] %s242
      %248 = dma.vmem_to_hbm [thread:$0]  %s243, 256, %s7, [#allocation9], 128, 128, 8
    $region41: #{tpu_custom_call.1} parent=1 // pred_fallthru
      _
    // Predicated region
    $region42: #{tpu_custom_call.1} parent=1 // pred_check
      _
    $region43: #{tpu_custom_call.1} parent=1 // pred_check_branch
      %250 = sbr.rel (0) target = $region45
    $region44: #{tpu_custom_call.1} parent=1 // pred_region
      %251 = dma.done [#allocation4], 256
    $region45: #{tpu_custom_call.1} parent=1 // pred_fallthru
      _
    // Predicated region
    $region46: #{tpu_custom_call.1} parent=1 // pred_check
      _
    $region47: #{tpu_custom_call.1} parent=1 // pred_check_branch
      %253 = sbr.rel (0) target = $region49
    $region48: #{tpu_custom_call.1} parent=1 // pred_region
      %254 = dma.done [#allocation9], 256
    $region49: #{tpu_custom_call.1} parent=1 // pred_fallthru
      _
    // Predicated region
    $region50: #{tpu_custom_call.1} parent=1 // pred_check
      _
    $region51: #{tpu_custom_call.1} parent=1 // pred_check_branch
      %256 = sbr.rel (0) target = $region53
    $region52: #{tpu_custom_call.1} parent=1 // pred_region
      %257 = dma.done [#allocation9], 256
    $region53: #{tpu_custom_call.1} parent=1 // pred_fallthru
      _
    %258 = vsyncpa [#allocation3], 1
    %259 = vsyncpa [#allocation6], 1
    %260 = vsyncpa [#allocation4], 1
    %261 = vsyncpa [#allocation9], 1

</llo_original>
